<compile_context>
chip_gen: v7x
topology: tpu7x:2x2x1
jax: 0.10.0
libtpu: 0.0.40
codegen_flags: <defaults>
</compile_context>

<pallas_src>
import functools

import jax
import jax.numpy as jnp
from jax.experimental import pallas as pl
from jax.experimental.pallas import tpu as pltpu


def _round_up(x, m):
    return ((x + m - 1) // m) * m


def _decoder_kernel(x_ref, comb_ref, o_ref):
    """One tile of the fused decoder.

    x_ref:    (TM, C)      activations tile
    comb_ref: (C, k*V)     combined deconv-tap x embedding weight (resident)
    o_ref:    (TM, k*V)    lane-dense logits tile
    """
    o_ref[...] = jnp.dot(
        x_ref[...], comb_ref[...],
        preferred_element_type=jnp.float32).astype(o_ref.dtype)


@functools.partial(jax.jit, static_argnames=("kernel_size", "stride", "block_m"))
def decoder_forward(x, deconv_w, emb_w, *, kernel_size, stride, block_m=1024):
    """x: (B, T, C); deconv_w: (C, 1, k, k); emb_w: (V, k)  ->  (B, L_out, V)."""
    B, T, C = x.shape
    k = kernel_size
    # TODO(synk): general stride != kernel_size would need overlap-add (col2im);
    # the reference config has stride == kernel_size so windows never overlap.
    assert stride == k, "fused decoder kernel assumes stride == kernel_size"
    V, cd = emb_w.shape
    assert cd == k and deconv_w.shape == (C, 1, k, k)
    L_out = (T - 1) * stride + k        # == T * k when stride == k

    # Fold deconv tap i and the embedding projection into one combined weight:
    # comb[c, i*V + v] = sum_j W[c, 0, i, j] * E[v, j].  Tiny, done once here.
    comb = jnp.einsum(
        "cij,vj->civ",
        deconv_w[:, 0].astype(jnp.float32),
        emb_w.astype(jnp.float32),
    ).reshape(C, k * V).astype(x.dtype)

    # Tile M = B*T; pad so the last tile is full (no OOB rows on VMEM refs).
    M = B * T
    tm = min(block_m, _round_up(M, 8))          # block sublane dim must be 8-aligned
    m_pad = _round_up(M, tm)
    x_flat = x.reshape(M, C)                    # metadata-only reshape
    if m_pad != M:
        x_flat = jnp.pad(x_flat, ((0, m_pad - M), (0, 0)))

    out_flat = pl.pallas_call(
        _decoder_kernel,
        out_shape=jax.ShapeDtypeStruct((m_pad, k * V), x.dtype),
        grid=(m_pad // tm,),
        in_specs=[
            pl.BlockSpec((tm, C), lambda i: (i, 0)),        # streamed per tile
            pl.BlockSpec((C, k * V), lambda i: (0, 0)),     # constant -> resident
        ],
        out_specs=pl.BlockSpec((tm, k * V), lambda i: (i, 0)),
        compiler_params=pltpu.CompilerParams(
            dimension_semantics=("parallel",)),
    )(x_flat, comb)

    # (M, k*V) -> (B, T*k, V): contiguous, metadata-only reshape after de-pad.
    return out_flat[:M].reshape(B, L_out, V)


def decoder_reference(x, deconv_w, emb_w):
    """Pure-JAX transcription of the PyTorch forward (stride == kernel_size)."""
    B, T, C = x.shape
    k = deconv_w.shape[-1]
    y = jnp.einsum("btc,cij->btij", x, deconv_w[:, 0])    # ConvTranspose2d, s == k
    y = y.reshape(B, T * k, k)                            # (B, L_out, k)
    return jnp.einsum("blj,vj->blv", y, emb_w)            # @ embedding.weight.T


if __name__ == "__main__":
    class Config:
        char_dim = 4
        kernel_size = 4
        stride = 4
        out_channels = 32

    cfg = Config()
    key = jax.random.PRNGKey(0)
    kx, kw, ke = jax.random.split(key, 3)

    B, T, C = 2, 8, cfg.out_channels
    x = jax.random.normal(kx, (B, T, C), dtype=jnp.float32)
    deconv_w = 0.02 * jax.random.normal(
        kw, (cfg.out_channels, 1, cfg.kernel_size, cfg.kernel_size),
        dtype=jnp.float32)
    emb_w = jax.random.normal(ke, (256, cfg.char_dim), dtype=jnp.float32)

    out = decoder_forward(x, deconv_w, emb_w,
                          kernel_size=cfg.kernel_size, stride=cfg.stride)
    out = jax.block_until_ready(out)

    L_out = (T - 1) * cfg.stride + cfg.kernel_size
    assert out.shape == (B, L_out, 256), out.shape
    assert out.dtype == jnp.float32

    ref = decoder_reference(x, deconv_w, emb_w)
    assert jnp.allclose(out, ref, atol=1e-4, rtol=1e-4), float(
        jnp.max(jnp.abs(out - ref)))

    print("KERNEL_OK")
</pallas_src>

<mosaic_0001>
module attributes {stable_mosaic.version = 11 : i64} {
  func.func @_decoder_kernel(%arg0: i32, %arg1: memref<16x32xf32, #tpu.memory_space<vmem>>, %arg2: memref<32x1024xf32, #tpu.memory_space<vmem>>, %arg3: memref<16x1024xf32, #tpu.memory_space<vmem>>) attributes {dimension_semantics = [#tpu.dimension_semantics<parallel>], iteration_bounds = array<i64: 1>, scalar_prefetch = 0 : i64, scratch_operands = 0 : i64, tpu.core_type = #tpu.core_type<tc>, window_params = [{transform_indices = @transform_0, window_bounds = array<i64: 16, 32>}, {pipeline_mode = #tpu.pipeline_mode<synchronous>, transform_indices = @transform_1, window_bounds = array<i64: 32, 1024>}, {transform_indices = @transform_2, window_bounds = array<i64: 16, 1024>}]} {
    %c0 = arith.constant 0 : index
    %c0_0 = arith.constant 0 : index
    %0 = vector.load %arg1[%c0, %c0_0] : memref<16x32xf32, #tpu.memory_space<vmem>>, vector<16x32xf32>
    %c0_1 = arith.constant 0 : index
    %c0_2 = arith.constant 0 : index
    %1 = vector.load %arg2[%c0_1, %c0_2] : memref<32x1024xf32, #tpu.memory_space<vmem>>, vector<32x1024xf32>
    %cst = arith.constant dense<0.000000e+00> : vector<16x1024xf32>
    %2 = tpu.matmul %0, %1, %cst {dimension_numbers = #tpu.dot_dimension_numbers<[1], [0], [0], [1], [0, 0, 1, 1], [], []>} : vector<16x32xf32>, vector<32x1024xf32>, vector<16x1024xf32> -> vector<16x1024xf32>
    %c0_3 = arith.constant 0 : index
    %c0_4 = arith.constant 0 : index
    %3 = vector.load %arg3[%c0_3, %c0_4] : memref<16x1024xf32, #tpu.memory_space<vmem>>, vector<16x1024xf32>
    tpu.vector_store %arg3[%c0_3, %c0_4], %2 {strides = array<i32>} : memref<16x1024xf32, #tpu.memory_space<vmem>>, vector<16x1024xf32>,
    return
  }
  func.func @transform_0(%arg0: i32) -> (i32, i32) {
    %c0_i32 = arith.constant 0 : i32
    %c0_i32_0 = arith.constant 0 : i32
    return %arg0, %c0_i32 : i32, i32
  }
  func.func @transform_1(%arg0: i32) -> (i32, i32) {
    %c0_i32 = arith.constant 0 : i32
    %c0_i32_0 = arith.constant 0 : i32
    %c0_i32_1 = arith.constant 0 : i32
    return %c0_i32, %c0_i32_0 : i32, i32
  }
  func.func @transform_2(%arg0: i32) -> (i32, i32) {
    %c0_i32 = arith.constant 0 : i32
    %c0_i32_0 = arith.constant 0 : i32
    return %arg0, %c0_i32 : i32, i32
  }
}

</mosaic_0001>

<llo_original>
// kernel: decoder_forward.1
$region0: #{decoder_forward.1}
  #allocation0 [shape = 'u32[]', space=smem, size = 0x4, offset = 0x4, fixed_abs, tag = 'smem constant byte address 0x4 - core index']
  #allocation1 [shape = 'u32[144,128]{1,0:T(1,128)}', space=vmem, size = 0x12000, scoped, tag = 'internal scratch']
  %s0 = inlined_call_operand.vmem [shape: f32[16,32], index: 0, kind: input, shape index: {}]
  %s1 = inlined_call_operand.vmem [shape: f32[32,1024], index: 1, kind: input, shape index: {}]
  %s2 = inlined_call_operand.vmem [shape: f32[16,1024], index: 2, kind: output, shape index: {}]
  %s3 = sld [smem:[#allocation0]]
  $region18: #{decoder_forward.1} parent=0
    _
  %s5 = ssub.s32 1, %s3
  %s6 = scalar_select 0, %s5, %s3
  // Predicated region
  $region2: #{decoder_forward.1} parent=0 // pred_check
    _
  $region3: #{decoder_forward.1} parent=0 // pred_check_branch
    %8 = sbr.rel (0) target = $region5
  $region4: #{decoder_forward.1} parent=0 // pred_region
    _
  $region5: #{decoder_forward.1} parent=0 // pred_fallthru
    _
  // Predicated region
  $region6: #{decoder_forward.1} parent=0 // pred_check
    _
  $region7: #{decoder_forward.1} parent=0 // pred_check_branch
    %10 = sbr.rel (0) target = $region9
  $region8: #{decoder_forward.1} parent=0 // pred_region
    _
  $region9: #{decoder_forward.1} parent=0 // pred_fallthru
    _
  %v11 = vld [vmem:[%s0] sm:$0xff]
  %v12 = vld [vmem:[%s0 + $0x8] sm:$0xff]
  %v13 = vld [vmem:[%s1] sm:$0xff]
  %v14 = vld [vmem:[%s1 + $0x8] sm:$0xff]
  %v15 = vld [vmem:[%s1 + $0x10] sm:$0xff]
  %v16 = vld [vmem:[%s1 + $0x18] sm:$0xff]
  %v17 = vld [vmem:[%s1 + $0x20] sm:$0xff]
  %v18 = vld [vmem:[%s1 + $0x28] sm:$0xff]
  %v19 = vld [vmem:[%s1 + $0x30] sm:$0xff]
  %v20 = vld [vmem:[%s1 + $0x38] sm:$0xff]
  %v21 = vld [vmem:[%s1 + $0x40] sm:$0xff]
  %v22 = vld [vmem:[%s1 + $0x48] sm:$0xff]
  %v23 = vld [vmem:[%s1 + $0x50] sm:$0xff]
  %v24 = vld [vmem:[%s1 + $0x58] sm:$0xff]
  %v25 = vld [vmem:[%s1 + $0x60] sm:$0xff]
  %v26 = vld [vmem:[%s1 + $0x68] sm:$0xff]
  %v27 = vld [vmem:[%s1 + $0x70] sm:$0xff]
  %v28 = vld [vmem:[%s1 + $0x78] sm:$0xff]
  %v29 = vld [vmem:[%s1 + $0x80] sm:$0xff]
  %v30 = vld [vmem:[%s1 + $0x88] sm:$0xff]
  %v31 = vld [vmem:[%s1 + $0x90] sm:$0xff]
  %v32 = vld [vmem:[%s1 + $0x98] sm:$0xff]
  %v33 = vld [vmem:[%s1 + $0xa0] sm:$0xff]
  %v34 = vld [vmem:[%s1 + $0xa8] sm:$0xff]
  %v35 = vld [vmem:[%s1 + $0xb0] sm:$0xff]
  %v36 = vld [vmem:[%s1 + $0xb8] sm:$0xff]
  %v37 = vld [vmem:[%s1 + $0xc0] sm:$0xff]
  %v38 = vld [vmem:[%s1 + $0xc8] sm:$0xff]
  %v39 = vld [vmem:[%s1 + $0xd0] sm:$0xff]
  %v40 = vld [vmem:[%s1 + $0xd8] sm:$0xff]
  %v41 = vld [vmem:[%s1 + $0xe0] sm:$0xff]
  %v42 = vld [vmem:[%s1 + $0xe8] sm:$0xff]
  %v43 = vld [vmem:[%s1 + $0xf0] sm:$0xff]
  %v44 = vld [vmem:[%s1 + $0xf8] sm:$0xff]
  %vm45 = vcmask 261120
  %v47 = vsel %vm45, %v11, 0
  %v50 = vsel %vm45, %v12, 0
  %52 = vmatprep.subr.mxu0 %v14
  %53 = vmatpush1.msra.mxu0 %v13
  %54 = vmatprep.subr.mxu0 %v22
  %55 = vmatpush1.msra.mxu0 %v21
  %56 = vmatprep.subr.mxu0 %v30
  %57 = vmatpush1.msra.mxu0 %v29
  %58 = vmatprep.subr.mxu0 %v38
  %59 = vmatpush1.msra.mxu0 %v37
  %60 = vmatprep.subr.mxu0 0.0
  %61 = vmatpush1.msra.mxu0 0.0
  %62 = vmatprep.subr.mxu0 0.0
  %63 = vmatpush1.msra.mxu0 0.0
  %64 = vmatprep.subr.mxu0 0.0
  %65 = vmatpush1.msra.mxu0 0.0
  %66 = vmatprep.subr.mxu0 0.0
  %67 = vmatpush1.msra.mxu0 0.0
  %68 = vmatprep.subr.mxu0 0.0
  %69 = vmatpush1.msra.mxu0 0.0
  %70 = vmatprep.subr.mxu0 0.0
  %71 = vmatpush1.msra.mxu0 0.0
  %72 = vmatprep.subr.mxu0 0.0
  %73 = vmatpush1.msra.mxu0 0.0
  %74 = vmatprep.subr.mxu0 0.0
  %75 = vmatpush1.msra.mxu0 0.0
  %76 = vmatprep.subr.mxu0 0.0
  %77 = vmatpush1.msra.mxu0 0.0
  %78 = vmatprep.subr.mxu0 0.0
  %79 = vmatpush1.msra.mxu0 0.0
  %80 = vmatprep.subr.mxu0 0.0
  %81 = vmatpush1.msra.mxu0 0.0
  %82 = vmatprep.subr.mxu0 0.0
  %83 = vmatpush1.msra.mxu0 0.0
  %84 = vmatprep.subr.mxu0 0.0
  %85 = vmatpush1.msra.mxu0 0.0
  %86 = vmatprep.subr.mxu0 0.0
  %87 = vmatpush1.msra.mxu0 0.0
  %88 = vmatprep.subr.mxu0 0.0
  %89 = vmatpush1.msra.mxu0 0.0
  %90 = vmatprep.subr.mxu0 0.0
  %91 = vmatpush1.msra.mxu0 0.0
  %92 = vmatprep.subr.mxu0 0.0
  %93 = vmatpush1.msra.mxu0 0.0
  %94 = vmatprep.subr.mxu0 0.0
  %95 = vmatpush1.msra.mxu0 0.0
  %96 = vmatprep.subr.mxu0 0.0
  %97 = vmatpush1.msra.mxu0 0.0
  %98 = vmatprep.subr.mxu0 0.0
  %99 = vmatpush1.msra.mxu0 0.0
  %100 = vmatprep.subr.mxu0 0.0
  %101 = vmatpush1.msra.mxu0 0.0
  %102 = vmatprep.subr.mxu0 0.0
  %103 = vmatpush1.msra.mxu0 0.0
  %104 = vmatprep.subr.mxu0 0.0
  %105 = vmatpush1.msra.mxu0 0.0
  %106 = vmatprep.subr.mxu0 0.0
  %107 = vmatpush1.msra.mxu0 0.0
  %108 = vmatprep.subr.mxu0 0.0
  %109 = vmatpush1.msra.mxu0 0.0
  %110 = vmatprep.subr.mxu0 0.0
  %111 = vmatpush1.msra.mxu0 0.0
  %112 = vmatprep.subr.mxu0 0.0
  %113 = vmatpush1.msra.mxu0 0.0
  %114 = vmatprep.subr.mxu0 0.0
  %115 = vmatpush1.msra.mxu0 0.0
  %116 = vmatprep.mubr.f32.mxu0 0.0
  %117 = vmatmul.mubr.f32.gmra.mrb[0].mxu0 %v47
  %v118 = vpop.f32.mrb[0].mxu0
  %v119 = vadd.f32 0.0, %v118
  %v120 = vpop.f32.mrb[0].mxu0
  %v121 = vadd.f32 0.0, %v120
  %122 = vmatprep.mubr.f32.mxu0 0.0
  %123 = vmatmul.mubr.f32.gmra.mrb[0].mxu0 %v50
  %v124 = vpop.f32.mrb[0].mxu0
  %v125 = vadd.f32 0.0, %v124
  %v126 = vpop.f32.mrb[0].mxu0
  %v127 = vadd.f32 0.0, %v126
  %128 = vdwg.mxu0
  %129 = vmatprep.subr.mxu0 %v16
  %130 = vmatpush1.msra.mxu0 %v15
  %131 = vmatprep.subr.mxu0 %v24
  %132 = vmatpush1.msra.mxu0 %v23
  %133 = vmatprep.subr.mxu0 %v32
  %134 = vmatpush1.msra.mxu0 %v31
  %135 = vmatprep.subr.mxu0 %v40
  %136 = vmatpush1.msra.mxu0 %v39
  %137 = vmatprep.subr.mxu0 0.0
  %138 = vmatpush1.msra.mxu0 0.0
  %139 = vmatprep.subr.mxu0 0.0
  %140 = vmatpush1.msra.mxu0 0.0
  %141 = vmatprep.subr.mxu0 0.0
  %142 = vmatpush1.msra.mxu0 0.0
  %143 = vmatprep.subr.mxu0 0.0
  %144 = vmatpush1.msra.mxu0 0.0
  %145 = vmatprep.subr.mxu0 0.0
  %146 = vmatpush1.msra.mxu0 0.0
  %147 = vmatprep.subr.mxu0 0.0
  %148 = vmatpush1.msra.mxu0 0.0
  %149 = vmatprep.subr.mxu0 0.0
  %150 = vmatpush1.msra.mxu0 0.0
  %151 = vmatprep.subr.mxu0 0.0
  %152 = vmatpush1.msra.mxu0 0.0
  %153 = vmatprep.subr.mxu0 0.0
  %154 = vmatpush1.msra.mxu0 0.0
  %155 = vmatprep.subr.mxu0 0.0
  %156 = vmatpush1.msra.mxu0 0.0
  %157 = vmatprep.subr.mxu0 0.0
  %158 = vmatpush1.msra.mxu0 0.0
  %159 = vmatprep.subr.mxu0 0.0
  %160 = vmatpush1.msra.mxu0 0.0
  %161 = vmatprep.subr.mxu0 0.0
  %162 = vmatpush1.msra.mxu0 0.0
  %163 = vmatprep.subr.mxu0 0.0
  %164 = vmatpush1.msra.mxu0 0.0
  %165 = vmatprep.subr.mxu0 0.0
  %166 = vmatpush1.msra.mxu0 0.0
  %167 = vmatprep.subr.mxu0 0.0
  %168 = vmatpush1.msra.mxu0 0.0
  %169 = vmatprep.subr.mxu0 0.0
  %170 = vmatpush1.msra.mxu0 0.0
  %171 = vmatprep.subr.mxu0 0.0
  %172 = vmatpush1.msra.mxu0 0.0
  %173 = vmatprep.subr.mxu0 0.0
  %174 = vmatpush1.msra.mxu0 0.0
  %175 = vmatprep.subr.mxu0 0.0
  %176 = vmatpush1.msra.mxu0 0.0
  %177 = vmatprep.subr.mxu0 0.0
  %178 = vmatpush1.msra.mxu0 0.0
  %179 = vmatprep.subr.mxu0 0.0
  %180 = vmatpush1.msra.mxu0 0.0
  %181 = vmatprep.subr.mxu0 0.0
  %182 = vmatpush1.msra.mxu0 0.0
  %183 = vmatprep.subr.mxu0 0.0
  %184 = vmatpush1.msra.mxu0 0.0
  %185 = vmatprep.subr.mxu0 0.0
  %186 = vmatpush1.msra.mxu0 0.0
  %187 = vmatprep.subr.mxu0 0.0
  %188 = vmatpush1.msra.mxu0 0.0
  %189 = vmatprep.subr.mxu0 0.0
  %190 = vmatpush1.msra.mxu0 0.0
  %191 = vmatprep.subr.mxu0 0.0
  %192 = vmatpush1.msra.mxu0 0.0
  %193 = vmatprep.mubr.f32.mxu0 0.0
  %194 = vmatmul.mubr.f32.gmra.mrb[0].mxu0 %v47
  %v195 = vpop.f32.mrb[0].mxu0
  %v196 = vadd.f32 0.0, %v195
  %v197 = vpop.f32.mrb[0].mxu0
  %v198 = vadd.f32 0.0, %v197
  %199 = vmatprep.mubr.f32.mxu0 0.0
  %200 = vmatmul.mubr.f32.gmra.mrb[0].mxu0 %v50
  %v201 = vpop.f32.mrb[0].mxu0
  %v202 = vadd.f32 0.0, %v201
  %v203 = vpop.f32.mrb[0].mxu0
  %v204 = vadd.f32 0.0, %v203
  %205 = vdwg.mxu0
  %206 = vmatprep.subr.mxu0 %v18
  %207 = vmatpush1.msra.mxu0 %v17
  %208 = vmatprep.subr.mxu0 %v26
  %209 = vmatpush1.msra.mxu0 %v25
  %210 = vmatprep.subr.mxu0 %v34
  %211 = vmatpush1.msra.mxu0 %v33
  %212 = vmatprep.subr.mxu0 %v42
  %213 = vmatpush1.msra.mxu0 %v41
  %214 = vmatprep.subr.mxu0 0.0
  %215 = vmatpush1.msra.mxu0 0.0
  %216 = vmatprep.subr.mxu0 0.0
  %217 = vmatpush1.msra.mxu0 0.0
  %218 = vmatprep.subr.mxu0 0.0
  %219 = vmatpush1.msra.mxu0 0.0
  %220 = vmatprep.subr.mxu0 0.0
  %221 = vmatpush1.msra.mxu0 0.0
  %222 = vmatprep.subr.mxu0 0.0
  %223 = vmatpush1.msra.mxu0 0.0
  %224 = vmatprep.subr.mxu0 0.0
  %225 = vmatpush1.msra.mxu0 0.0
  %226 = vmatprep.subr.mxu0 0.0
  %227 = vmatpush1.msra.mxu0 0.0
  %228 = vmatprep.subr.mxu0 0.0
  %229 = vmatpush1.msra.mxu0 0.0
  %230 = vmatprep.subr.mxu0 0.0
  %231 = vmatpush1.msra.mxu0 0.0
  %232 = vmatprep.subr.mxu0 0.0
  %233 = vmatpush1.msra.mxu0 0.0
  %234 = vmatprep.subr.mxu0 0.0
  %235 = vmatpush1.msra.mxu0 0.0
  %236 = vmatprep.subr.mxu0 0.0
  %237 = vmatpush1.msra.mxu0 0.0
  %238 = vmatprep.subr.mxu0 0.0
  %239 = vmatpush1.msra.mxu0 0.0
  %240 = vmatprep.subr.mxu0 0.0
  %241 = vmatpush1.msra.mxu0 0.0
  %242 = vmatprep.subr.mxu0 0.0
  %243 = vmatpush1.msra.mxu0 0.0
  %244 = vmatprep.subr.mxu0 0.0
  %245 = vmatpush1.msra.mxu0 0.0
  %246 = vmatprep.subr.mxu0 0.0
  %247 = vmatpush1.msra.mxu0 0.0
  %248 = vmatprep.subr.mxu0 0.0
  %249 = vmatpush1.msra.mxu0 0.0
  %250 = vmatprep.subr.mxu0 0.0
  %251 = vmatpush1.msra.mxu0 0.0
  %252 = vmatprep.subr.mxu0 0.0
  %253 = vmatpush1.msra.mxu0 0.0
  %254 = vmatprep.subr.mxu0 0.0
  %255 = vmatpush1.msra.mxu0 0.0
  %256 = vmatprep.subr.mxu0 0.0
  %257 = vmatpush1.msra.mxu0 0.0
  %258 = vmatprep.subr.mxu0 0.0
  %259 = vmatpush1.msra.mxu0 0.0
  %260 = vmatprep.subr.mxu0 0.0
  %261 = vmatpush1.msra.mxu0 0.0
  %262 = vmatprep.subr.mxu0 0.0
  %263 = vmatpush1.msra.mxu0 0.0
  %264 = vmatprep.subr.mxu0 0.0
  %265 = vmatpush1.msra.mxu0 0.0
  %266 = vmatprep.subr.mxu0 0.0
  %267 = vmatpush1.msra.mxu0 0.0
  %268 = vmatprep.subr.mxu0 0.0
  %269 = vmatpush1.msra.mxu0 0.0
  %270 = vmatprep.mubr.f32.mxu0 0.0
  %271 = vmatmul.mubr.f32.gmra.mrb[0].mxu0 %v47
  %v272 = vpop.f32.mrb[0].mxu0
  %v273 = vadd.f32 0.0, %v272
  %v274 = vpop.f32.mrb[0].mxu0
  %v275 = vadd.f32 0.0, %v274
  %276 = vmatprep.mubr.f32.mxu0 0.0
  %277 = vmatmul.mubr.f32.gmra.mrb[0].mxu0 %v50
  %v278 = vpop.f32.mrb[0].mxu0
  %v279 = vadd.f32 0.0, %v278
  %v280 = vpop.f32.mrb[0].mxu0
  %v281 = vadd.f32 0.0, %v280
  %282 = vdwg.mxu0
  %283 = vmatprep.subr.mxu0 %v20
  %284 = vmatpush1.msra.mxu0 %v19
  %285 = vmatprep.subr.mxu0 %v28
  %286 = vmatpush1.msra.mxu0 %v27
  %287 = vmatprep.subr.mxu0 %v36
  %288 = vmatpush1.msra.mxu0 %v35
  %289 = vmatprep.subr.mxu0 %v44
  %290 = vmatpush1.msra.mxu0 %v43
  %291 = vmatprep.subr.mxu0 0.0
  %292 = vmatpush1.msra.mxu0 0.0
  %293 = vmatprep.subr.mxu0 0.0
  %294 = vmatpush1.msra.mxu0 0.0
  %295 = vmatprep.subr.mxu0 0.0
  %296 = vmatpush1.msra.mxu0 0.0
  %297 = vmatprep.subr.mxu0 0.0
  %298 = vmatpush1.msra.mxu0 0.0
  %299 = vmatprep.subr.mxu0 0.0
  %300 = vmatpush1.msra.mxu0 0.0
  %301 = vmatprep.subr.mxu0 0.0
  %302 = vmatpush1.msra.mxu0 0.0
  %303 = vmatprep.subr.mxu0 0.0
  %304 = vmatpush1.msra.mxu0 0.0
  %305 = vmatprep.subr.mxu0 0.0
  %306 = vmatpush1.msra.mxu0 0.0
  %307 = vmatprep.subr.mxu0 0.0
  %308 = vmatpush1.msra.mxu0 0.0
  %309 = vmatprep.subr.mxu0 0.0
  %310 = vmatpush1.msra.mxu0 0.0
  %311 = vmatprep.subr.mxu0 0.0
  %312 = vmatpush1.msra.mxu0 0.0
  %313 = vmatprep.subr.mxu0 0.0
  %314 = vmatpush1.msra.mxu0 0.0
  %315 = vmatprep.subr.mxu0 0.0
  %316 = vmatpush1.msra.mxu0 0.0
  %317 = vmatprep.subr.mxu0 0.0
  %318 = vmatpush1.msra.mxu0 0.0
  %319 = vmatprep.subr.mxu0 0.0
  %320 = vmatpush1.msra.mxu0 0.0
  %321 = vmatprep.subr.mxu0 0.0
  %322 = vmatpush1.msra.mxu0 0.0
  %323 = vmatprep.subr.mxu0 0.0
  %324 = vmatpush1.msra.mxu0 0.0
  %325 = vmatprep.subr.mxu0 0.0
  %326 = vmatpush1.msra.mxu0 0.0
  %327 = vmatprep.subr.mxu0 0.0
  %328 = vmatpush1.msra.mxu0 0.0
  %329 = vmatprep.subr.mxu0 0.0
  %330 = vmatpush1.msra.mxu0 0.0
  %331 = vmatprep.subr.mxu0 0.0
  %332 = vmatpush1.msra.mxu0 0.0
  %333 = vmatprep.subr.mxu0 0.0
  %334 = vmatpush1.msra.mxu0 0.0
  %335 = vmatprep.subr.mxu0 0.0
  %336 = vmatpush1.msra.mxu0 0.0
  %337 = vmatprep.subr.mxu0 0.0
  %338 = vmatpush1.msra.mxu0 0.0
  %339 = vmatprep.subr.mxu0 0.0
  %340 = vmatpush1.msra.mxu0 0.0
  %341 = vmatprep.subr.mxu0 0.0
  %342 = vmatpush1.msra.mxu0 0.0
  %343 = vmatprep.subr.mxu0 0.0
  %344 = vmatpush1.msra.mxu0 0.0
  %345 = vmatprep.subr.mxu0 0.0
  %346 = vmatpush1.msra.mxu0 0.0
  %347 = vmatprep.mubr.f32.mxu0 0.0
  %348 = vmatmul.mubr.f32.gmra.mrb[0].mxu0 %v47
  %v349 = vpop.f32.mrb[0].mxu0
  %v350 = vadd.f32 0.0, %v349
  %v351 = vpop.f32.mrb[0].mxu0
  %v352 = vadd.f32 0.0, %v351
  %353 = vmatprep.mubr.f32.mxu0 0.0
  %354 = vmatmul.mubr.f32.gmra.mrb[0].mxu0 %v50
  %v355 = vpop.f32.mrb[0].mxu0
  %v356 = vadd.f32 0.0, %v355
  %v357 = vpop.f32.mrb[0].mxu0
  %v358 = vadd.f32 0.0, %v357
  %359 = vdwg.mxu0
  %360 = vst [vmem:[%s2] sm:$0xff] %v119
  %361 = vst [vmem:[%s2 + $0x8] sm:$0xff] %v121
  %362 = vst [vmem:[%s2 + $0x10] sm:$0xff] %v196
  %363 = vst [vmem:[%s2 + $0x18] sm:$0xff] %v198
  %364 = vst [vmem:[%s2 + $0x20] sm:$0xff] %v273
  %365 = vst [vmem:[%s2 + $0x28] sm:$0xff] %v275
  %366 = vst [vmem:[%s2 + $0x30] sm:$0xff] %v350
  %367 = vst [vmem:[%s2 + $0x38] sm:$0xff] %v352
  %368 = vst [vmem:[%s2 + $0x40] sm:$0xff] %v125
  %369 = vst [vmem:[%s2 + $0x48] sm:$0xff] %v127
  %370 = vst [vmem:[%s2 + $0x50] sm:$0xff] %v202
  %371 = vst [vmem:[%s2 + $0x58] sm:$0xff] %v204
  %372 = vst [vmem:[%s2 + $0x60] sm:$0xff] %v279
  %373 = vst [vmem:[%s2 + $0x68] sm:$0xff] %v281
  %374 = vst [vmem:[%s2 + $0x70] sm:$0xff] %v356
  %375 = vst [vmem:[%s2 + $0x78] sm:$0xff] %v358
  // Predicated region
  $region10: #{decoder_forward.1} parent=0 // pred_check
    _
  $region11: #{decoder_forward.1} parent=0 // pred_check_branch
    %377 = sbr.rel (0) target = $region13
  $region12: #{decoder_forward.1} parent=0 // pred_region
    _
  $region13: #{decoder_forward.1} parent=0 // pred_fallthru
    _
  // Predicated region
  $region14: #{decoder_forward.1} parent=0 // pred_check
    _
  $region15: #{decoder_forward.1} parent=0 // pred_check_branch
    %379 = sbr.rel (0) target = $region17
  $region16: #{decoder_forward.1} parent=0 // pred_region
    _
  $region17: #{decoder_forward.1} parent=0 // pred_fallthru
    _

</llo_original>
